<compile_context>
chip_gen: v6e
topology: v6e:2x2x1
jax: 0.10.0
libtpu: 0.0.40
codegen_flags: <defaults>
</compile_context>

<pallas_src>
import functools

import jax
import jax.numpy as jnp
from jax.experimental import pallas as pl
from jax.experimental.pallas import tpu as pltpu


def _round_up(n, m):
    return ((n + m - 1) // m) * m


# ---------------------------------------------------------------------------
# Kernel: one batch tile through all three layers, weights resident in VMEM.
# ---------------------------------------------------------------------------
def mlp_kernel(x_ref, w1_ref, b1_ref, w2_ref, b2_ref, w3_ref, b3_ref, o_ref):
    # Layer 1: x @ W1 + b1, ReLU   (bf16 operands, f32 MXU accumulation)
    h = jnp.dot(x_ref[...], w1_ref[...], preferred_element_type=jnp.float32)
    h = jnp.maximum(h + b1_ref[...], 0.0).astype(jnp.bfloat16)
    # Layer 2: h @ W2 + b2, ReLU
    h = jnp.dot(h, w2_ref[...], preferred_element_type=jnp.float32)
    h = jnp.maximum(h + b2_ref[...], 0.0).astype(jnp.bfloat16)
    # Layer 3: h @ W3 + b3 (no activation)
    out = jnp.dot(h, w3_ref[...], preferred_element_type=jnp.float32) + b3_ref[...]
    o_ref[...] = out.astype(o_ref.dtype)


# ---------------------------------------------------------------------------
# Generation-aware VMEM budget (queried once, cached).
# ---------------------------------------------------------------------------
_VMEM_LIMIT_BYTES = None


def _vmem_limit_bytes():
    global _VMEM_LIMIT_BYTES
    if _VMEM_LIMIT_BYTES is None:
        try:
            cap = int(getattr(pltpu.get_tpu_info(), "vmem_capacity_bytes", 0)) or (64 << 20)
        except Exception:
            cap = 64 << 20  # conservative fallback: v7x per-TC VMEM
        # ~8 MiB headroom below physical; cap at 100 MiB on 128 MiB chips.
        _VMEM_LIMIT_BYTES = int(max(32 << 20, min(cap - (8 << 20), 100 << 20)))
    return _VMEM_LIMIT_BYTES


# ---------------------------------------------------------------------------
# One-time parameter preparation (hoisted out of the per-call path).
# ---------------------------------------------------------------------------
def prepare_params(params):
    """Pad every feature dim to a multiple of 128 (lane-dense, unmasked stores),
    cast weights to bf16 (MXU-native), keep biases in f32.  Store the result
    and reuse it across calls."""
    w1, b1, w2, b2, w3, b3 = params
    in_dim, hid = w1.shape
    ncls = w3.shape[1]
    in_p, hid_p, ncls_p = (_round_up(d, 128) for d in (in_dim, hid, ncls))
    bf16, f32 = jnp.bfloat16, jnp.float32
    w1p = jnp.pad(w1.astype(bf16), ((0, in_p - in_dim), (0, hid_p - hid)))
    w2p = jnp.pad(w2.astype(bf16), ((0, hid_p - hid), (0, hid_p - hid)))
    w3p = jnp.pad(w3.astype(bf16), ((0, hid_p - hid), (0, ncls_p - ncls)))
    b1p = jnp.pad(b1.astype(f32).reshape(1, -1), ((0, 0), (0, hid_p - hid)))
    b2p = jnp.pad(b2.astype(f32).reshape(1, -1), ((0, 0), (0, hid_p - hid)))
    b3p = jnp.pad(b3.astype(f32).reshape(1, -1), ((0, 0), (0, ncls_p - ncls)))
    return (w1p, b1p, w2p, b2p, w3p, b3p)


# ---------------------------------------------------------------------------
# Jitted forward.  x: (B, input_size) f32 -> (B, num_classes) out_dtype.
# ---------------------------------------------------------------------------
@functools.partial(jax.jit, static_argnames=("num_classes", "tile_b", "out_dtype"))
def neural_net_forward(x, padded_params, *, num_classes, tile_b=None,
                       out_dtype=jnp.bfloat16):
    w1p, b1p, w2p, b2p, w3p, b3p = padded_params
    B, in_dim = x.shape
    in_p, hid_p = w1p.shape
    ncls_p = w3p.shape[1]
    out_itemsize = jnp.dtype(out_dtype).itemsize

    # ---- batch tiling: single step for small batches, 512-row tiles beyond.
    if tile_b is None:
        b_pad16 = _round_up(B, 16)
        tile_b = b_pad16 if b_pad16 <= 512 else 512
    tile_b = _round_up(tile_b, 16)
    B_p = _round_up(max(B, tile_b), tile_b)
    grid = (B_p // tile_b,)

    # ---- VMEM budget check (resident double-buffered weights + x/out tiles).
    vmem_limit = _vmem_limit_bytes()
    weight_bytes = 2 * (w1p.size + w2p.size + w3p.size) * 2 \
                   + 2 * (b1p.size + b2p.size + b3p.size) * 4
    tile_bytes = 2 * tile_b * in_p * 2 + 2 * tile_b * ncls_p * out_itemsize
    if weight_bytes + tile_bytes > vmem_limit:
        # Not needed at these sizes; a hidden-dim-tiled accumulator path
        # (grid axis "arbitrary" + f32 acc scratch + pl.when init/finalize)
        # would be required for very large hidden sizes.
        raise ValueError(
            f"Resident weights + tiles ({(weight_bytes + tile_bytes) >> 20} MiB) "
            f"exceed the VMEM budget ({vmem_limit >> 20} MiB); reduce tile_b or "
            f"use a hidden-dim-tiled variant.")

    # ---- per-call x padding: cast to bf16 first, then pad (no f32 temp).
    xp = jnp.pad(x.astype(jnp.bfloat16), ((0, B_p - B), (0, in_p - in_dim)))

    def wspec(shape):
        return pl.BlockSpec(shape, lambda i: (0, 0))  # resident, constant block

    in_specs = [
        pl.BlockSpec((tile_b, in_p), lambda i: (i, 0)),  # x tile (pipelined)
        wspec((in_p, hid_p)),    # W1
        wspec((1, hid_p)),       # b1
        wspec((hid_p, hid_p)),   # W2
        wspec((1, hid_p)),       # b2
        wspec((hid_p, ncls_p)),  # W3
        wspec((1, ncls_p)),      # b3
    ]
    out_spec = pl.BlockSpec((tile_b, ncls_p), lambda i: (i, 0))

    out_p = pl.pallas_call(
        mlp_kernel,
        out_shape=jax.ShapeDtypeStruct((B_p, ncls_p), out_dtype),
        grid_spec=pltpu.PrefetchScalarGridSpec(
            num_scalar_prefetch=0,
            grid=grid,
            in_specs=in_specs,
            out_specs=out_spec,
        ),
        compiler_params=pltpu.CompilerParams(
            dimension_semantics=("parallel",),
            vmem_limit_bytes=vmem_limit,
        ),
    )(xp, w1p, b1p, w2p, b2p, w3p, b3p)

    return out_p[:B, :num_classes]


# ---------------------------------------------------------------------------
# Init matching PyTorch nn.Linear (weights stored transposed: (in, out)).
# ---------------------------------------------------------------------------
def init_params(key, input_size, hidden_size, num_classes):
    ks = jax.random.split(key, 6)

    def uniform(k, shape, fan_in):
        bound = 1.0 / jnp.sqrt(fan_in)
        return jax.random.uniform(k, shape, jnp.float32, -bound, bound)

    w1 = uniform(ks[0], (input_size, hidden_size), input_size)
    b1 = uniform(ks[1], (1, hidden_size), input_size)
    w2 = uniform(ks[2], (hidden_size, hidden_size), hidden_size)
    b2 = uniform(ks[3], (1, hidden_size), hidden_size)
    w3 = uniform(ks[4], (hidden_size, num_classes), hidden_size)
    b3 = uniform(ks[5], (1, num_classes), hidden_size)
    return (w1, b1, w2, b2, w3, b3)


def reference_forward(x, params):
    w1, b1, w2, b2, w3, b3 = params
    h = jnp.maximum(x @ w1 + b1, 0.0)
    h = jnp.maximum(h @ w2 + b2, 0.0)
    return h @ w3 + b3


if __name__ == "__main__":
    batch, input_size, hidden_size, num_classes = 64, 32, 64, 16
    key = jax.random.PRNGKey(0)
    kx, kp = jax.random.split(key)
    x = jax.random.normal(kx, (batch, input_size), jnp.float32)
    params = init_params(kp, input_size, hidden_size, num_classes)

    padded_params = prepare_params(params)          # one-time layout plumbing

    out = neural_net_forward(x, padded_params, num_classes=num_classes)
    out = jax.block_until_ready(out)

    ref = reference_forward(x, params)
    assert out.shape == (batch, num_classes)
    out_f32 = out.astype(jnp.float32)
    # bf16-grade accuracy: bf16 weights/activations/output, f32 accumulation.
    err = float(jnp.max(jnp.abs(out_f32 - ref)))
    assert jnp.allclose(out_f32, ref, atol=1e-1, rtol=1e-1), f"max abs err {err}"
    print("KERNEL_OK")
</pallas_src>

<mosaic_0001>
module attributes {stable_mosaic.version = 11 : i64} {
  func.func @mlp_kernel(%arg0: i32, %arg1: memref<64x128xbf16, #tpu.memory_space<vmem>>, %arg2: memref<128x128xbf16, #tpu.memory_space<vmem>>, %arg3: memref<1x128xf32, #tpu.memory_space<vmem>>, %arg4: memref<128x128xbf16, #tpu.memory_space<vmem>>, %arg5: memref<1x128xf32, #tpu.memory_space<vmem>>, %arg6: memref<128x128xbf16, #tpu.memory_space<vmem>>, %arg7: memref<1x128xf32, #tpu.memory_space<vmem>>, %arg8: memref<64x128xbf16, #tpu.memory_space<vmem>>) attributes {dimension_semantics = [#tpu.dimension_semantics<parallel>], iteration_bounds = array<i64: 1>, scalar_prefetch = 0 : i64, scratch_operands = 0 : i64, tpu.core_type = #tpu.core_type<tc>, window_params = [{transform_indices = @transform_0, window_bounds = array<i64: 64, 128>}, {pipeline_mode = #tpu.pipeline_mode<synchronous>, transform_indices = @transform_1, window_bounds = array<i64: 128, 128>}, {pipeline_mode = #tpu.pipeline_mode<synchronous>, transform_indices = @transform_2, window_bounds = array<i64: 1, 128>}, {pipeline_mode = #tpu.pipeline_mode<synchronous>, transform_indices = @transform_3, window_bounds = array<i64: 128, 128>}, {pipeline_mode = #tpu.pipeline_mode<synchronous>, transform_indices = @transform_4, window_bounds = array<i64: 1, 128>}, {pipeline_mode = #tpu.pipeline_mode<synchronous>, transform_indices = @transform_5, window_bounds = array<i64: 128, 128>}, {pipeline_mode = #tpu.pipeline_mode<synchronous>, transform_indices = @transform_6, window_bounds = array<i64: 1, 128>}, {transform_indices = @transform_7, window_bounds = array<i64: 64, 128>}]} {
    %c0 = arith.constant 0 : index
    %c0_0 = arith.constant 0 : index
    %0 = vector.load %arg1[%c0, %c0_0] : memref<64x128xbf16, #tpu.memory_space<vmem>>, vector<64x128xbf16>
    %c0_1 = arith.constant 0 : index
    %c0_2 = arith.constant 0 : index
    %1 = vector.load %arg2[%c0_1, %c0_2] : memref<128x128xbf16, #tpu.memory_space<vmem>>, vector<128x128xbf16>
    %cst = arith.constant dense<0.000000e+00> : vector<64x128xf32>
    %2 = tpu.matmul %0, %1, %cst {dimension_numbers = #tpu.dot_dimension_numbers<[1], [0], [0], [1], [0, 0, 1, 1], [], []>} : vector<64x128xbf16>, vector<128x128xbf16>, vector<64x128xf32> -> vector<64x128xf32>
    %c0_3 = arith.constant 0 : index
    %c0_4 = arith.constant 0 : index
    %3 = vector.load %arg3[%c0_3, %c0_4] : memref<1x128xf32, #tpu.memory_space<vmem>>, vector<1x128xf32>
    %4 = vector.broadcast %3 : vector<1x128xf32> to vector<64x128xf32>
    %5 = arith.addf %2, %4 : vector<64x128xf32>
    %cst_5 = arith.constant 0.000000e+00 : f32
    %6 = vector.broadcast %cst_5 : f32 to vector<64x128xf32>
    %7 = arith.maximumf %5, %6 : vector<64x128xf32>
    %8 = arith.truncf %7 : vector<64x128xf32> to vector<64x128xbf16>
    %c0_6 = arith.constant 0 : index
    %c0_7 = arith.constant 0 : index
    %9 = vector.load %arg4[%c0_6, %c0_7] : memref<128x128xbf16, #tpu.memory_space<vmem>>, vector<128x128xbf16>
    %cst_8 = arith.constant dense<0.000000e+00> : vector<64x128xf32>
    %10 = tpu.matmul %8, %9, %cst_8 {dimension_numbers = #tpu.dot_dimension_numbers<[1], [0], [0], [1], [0, 0, 1, 1], [], []>} : vector<64x128xbf16>, vector<128x128xbf16>, vector<64x128xf32> -> vector<64x128xf32>
    %c0_9 = arith.constant 0 : index
    %c0_10 = arith.constant 0 : index
    %11 = vector.load %arg5[%c0_9, %c0_10] : memref<1x128xf32, #tpu.memory_space<vmem>>, vector<1x128xf32>
    %12 = vector.broadcast %11 : vector<1x128xf32> to vector<64x128xf32>
    %13 = arith.addf %10, %12 : vector<64x128xf32>
    %cst_11 = arith.constant 0.000000e+00 : f32
    %14 = vector.broadcast %cst_11 : f32 to vector<64x128xf32>
    %15 = arith.maximumf %13, %14 : vector<64x128xf32>
    %16 = arith.truncf %15 : vector<64x128xf32> to vector<64x128xbf16>
    %c0_12 = arith.constant 0 : index
    %c0_13 = arith.constant 0 : index
    %17 = vector.load %arg6[%c0_12, %c0_13] : memref<128x128xbf16, #tpu.memory_space<vmem>>, vector<128x128xbf16>
    %cst_14 = arith.constant dense<0.000000e+00> : vector<64x128xf32>
    %18 = tpu.matmul %16, %17, %cst_14 {dimension_numbers = #tpu.dot_dimension_numbers<[1], [0], [0], [1], [0, 0, 1, 1], [], []>} : vector<64x128xbf16>, vector<128x128xbf16>, vector<64x128xf32> -> vector<64x128xf32>
    %c0_15 = arith.constant 0 : index
    %c0_16 = arith.constant 0 : index
    %19 = vector.load %arg7[%c0_15, %c0_16] : memref<1x128xf32, #tpu.memory_space<vmem>>, vector<1x128xf32>
    %20 = vector.broadcast %19 : vector<1x128xf32> to vector<64x128xf32>
    %21 = arith.addf %18, %20 : vector<64x128xf32>
    %22 = arith.truncf %21 : vector<64x128xf32> to vector<64x128xbf16>
    %c0_17 = arith.constant 0 : index
    %c0_18 = arith.constant 0 : index
    %23 = vector.load %arg8[%c0_17, %c0_18] : memref<64x128xbf16, #tpu.memory_space<vmem>>, vector<64x128xbf16>
    tpu.vector_store %arg8[%c0_17, %c0_18], %22 {strides = array<i32>} : memref<64x128xbf16, #tpu.memory_space<vmem>>, vector<64x128xbf16>,
    return
  }
  func.func @transform_0(%arg0: i32) -> (i32, i32) {
    %c0_i32 = arith.constant 0 : i32
    %c0_i32_0 = arith.constant 0 : i32
    return %arg0, %c0_i32 : i32, i32
  }
  func.func @transform_1(%arg0: i32) -> (i32, i32) {
    %c0_i32 = arith.constant 0 : i32
    %c0_i32_0 = arith.constant 0 : i32
    %c0_i32_1 = arith.constant 0 : i32
    return %c0_i32, %c0_i32_0 : i32, i32
  }
  func.func @transform_2(%arg0: i32) -> (i32, i32) {
    %c0_i32 = arith.constant 0 : i32
    %c0_i32_0 = arith.constant 0 : i32
    %c0_i32_1 = arith.constant 0 : i32
    return %c0_i32, %c0_i32_0 : i32, i32
  }
  func.func @transform_3(%arg0: i32) -> (i32, i32) {
    %c0_i32 = arith.constant 0 : i32
    %c0_i32_0 = arith.constant 0 : i32
    %c0_i32_1 = arith.constant 0 : i32
    return %c0_i32, %c0_i32_0 : i32, i32
  }
  func.func @transform_4(%arg0: i32) -> (i32, i32) {
    %c0_i32 = arith.constant 0 : i32
    %c0_i32_0 = arith.constant 0 : i32
    %c0_i32_1 = arith.constant 0 : i32
    return %c0_i32, %c0_i32_0 : i32, i32
  }
  func.func @transform_5(%arg0: i32) -> (i32, i32) {
    %c0_i32 = arith.constant 0 : i32
    %c0_i32_0 = arith.constant 0 : i32
    %c0_i32_1 = arith.constant 0 : i32
    return %c0_i32, %c0_i32_0 : i32, i32
  }
  func.func @transform_6(%arg0: i32) -> (i32, i32) {
    %c0_i32 = arith.constant 0 : i32
    %c0_i32_0 = arith.constant 0 : i32
    %c0_i32_1 = arith.constant 0 : i32
    return %c0_i32, %c0_i32_0 : i32, i32
  }
  func.func @transform_7(%arg0: i32) -> (i32, i32) {
    %c0_i32 = arith.constant 0 : i32
    %c0_i32_0 = arith.constant 0 : i32
    return %arg0, %c0_i32 : i32, i32
  }
}

</mosaic_0001>

<llo_original>
// kernel: neural_net_forward.1
$region0: #{neural_net_forward.1}
  #allocation0 [shape = 'u32[]', space=smem, size = 0x4, offset = 0x4, fixed_abs, tag = 'smem constant byte address 0x4 - core index']
  #allocation1 [shape = 'u32[144,128]{1,0:T(1,128)}', space=vmem, size = 0x12000, scoped, tag = 'internal scratch']
  %s0 = inlined_call_operand.vmem [shape: bf16[64,128], index: 0, kind: input, shape index: {}]
  %s1 = inlined_call_operand.vmem [shape: bf16[128,128], index: 1, kind: input, shape index: {}]
  %s2 = inlined_call_operand.vmem [shape: f32[1,128], index: 2, kind: input, shape index: {}]
  %s3 = inlined_call_operand.vmem [shape: bf16[128,128], index: 3, kind: input, shape index: {}]
  %s4 = inlined_call_operand.vmem [shape: f32[1,128], index: 4, kind: input, shape index: {}]
  %s5 = inlined_call_operand.hbm [shape: bf16[128,128], index: 5, kind: input, shape index: {}]
  %s6 = inlined_call_operand.vmem [shape: f32[1,128], index: 6, kind: input, shape index: {}]
  %s7 = inlined_call_operand.vmem [shape: bf16[64,128], index: 7, kind: output, shape index: {}]
  %s8 = sld [smem:[#allocation0]]
  $region42: #{neural_net_forward.1} parent=0
    _
  %s10 = ssub.s32 1, %s8
  %s11 = scalar_select 0, %s10, %s8
  $region1: #{neural_net_forward.1} parent=0
    #allocation2 [shape = 'u8[32768]{0}', space=vmem, size = 0x8000, scoped, tag = 'input window, operand 5, single buffered']
    #allocation3 [shape = 's32[1]{0}', space=sflag, size = 0x4, scoped, tag = 'scoped memory for neural_net_forward.1']
    %12 = vsyncpa [#allocation3], 0
    // Predicated region
    $region2: #{neural_net_forward.1} parent=1 // pred_check
      _
    $region3: #{neural_net_forward.1} parent=1 // pred_check_branch
      %14 = sbr.rel (0) target = $region5
    $region4: #{neural_net_forward.1} parent=1 // pred_region
      _
    $region5: #{neural_net_forward.1} parent=1 // pred_fallthru
      _
    // Predicated region
    $region6: #{neural_net_forward.1} parent=1 // pred_check
      _
    $region7: #{neural_net_forward.1} parent=1 // pred_check_branch
      %16 = sbr.rel (0) target = $region9
    $region8: #{neural_net_forward.1} parent=1 // pred_region
      _
    $region9: #{neural_net_forward.1} parent=1 // pred_fallthru
      _
    // Predicated region
    $region10: #{neural_net_forward.1} parent=1 // pred_check
      _
    $region11: #{neural_net_forward.1} parent=1 // pred_check_branch
      %18 = sbr.rel (0) target = $region13
    $region12: #{neural_net_forward.1} parent=1 // pred_region
      _
    $region13: #{neural_net_forward.1} parent=1 // pred_fallthru
      _
    // Predicated region
    $region14: #{neural_net_forward.1} parent=1 // pred_check
      _
    $region15: #{neural_net_forward.1} parent=1 // pred_check_branch
      %20 = sbr.rel (0) target = $region17
    $region16: #{neural_net_forward.1} parent=1 // pred_region
      _
    $region17: #{neural_net_forward.1} parent=1 // pred_fallthru
      _
    // Predicated region
    $region18: #{neural_net_forward.1} parent=1 // pred_check
      _
    $region19: #{neural_net_forward.1} parent=1 // pred_check_branch
      %22 = sbr.rel (0) target = $region21
    $region20: #{neural_net_forward.1} parent=1 // pred_region
      _
    $region21: #{neural_net_forward.1} parent=1 // pred_fallthru
      _
    // Predicated region
    $region22: #{neural_net_forward.1} parent=1 // pred_check
      _
    $region23: #{neural_net_forward.1} parent=1 // pred_check_branch
      %24 = sbr.rel (0) target = $region25
    $region24: #{neural_net_forward.1} parent=1 // pred_region
      %s26 = ssub.s32 1024, 1024
      %27 = vsyncadd [#allocation3], %s26
      %s28 = sshll.u32 [#allocation2], 4
      %s29 = int_to_ptr.vmem [resolvable:$true] %s28
      %34 = dma.hbm_to_vmem [thread:$0]  %s5, 1024, %s29, [#allocation3], 64, 64, 4
    $region25: #{neural_net_forward.1} parent=1 // pred_fallthru
      _
    // Predicated region
    $region26: #{neural_net_forward.1} parent=1 // pred_check
      _
    $region27: #{neural_net_forward.1} parent=1 // pred_check_branch
      %36 = sbr.rel (0) target = $region29
    $region28: #{neural_net_forward.1} parent=1 // pred_region
      _
    $region29: #{neural_net_forward.1} parent=1 // pred_fallthru
      _
    // Predicated region
    $region30: #{neural_net_forward.1} parent=1 // pred_check
      _
    $region31: #{neural_net_forward.1} parent=1 // pred_check_branch
      %38 = sbr.rel (0) target = $region33
    $region32: #{neural_net_forward.1} parent=1 // pred_region
      %39 = dma.done [#allocation3], 1024
    $region33: #{neural_net_forward.1} parent=1 // pred_fallthru
      _
    %v41 = vld [vmem:[%s0] sm:$0xf]
    %v42 = vld [vmem:[%s0 + $0x4] sm:$0xf]
    %v43 = vld [vmem:[%s0 + $0x8] sm:$0xf]
    %v44 = vld [vmem:[%s0 + $0xc] sm:$0xf]
    %v45 = vld [vmem:[%s0 + $0x10] sm:$0xf]
    %v46 = vld [vmem:[%s0 + $0x14] sm:$0xf]
    %v47 = vld [vmem:[%s0 + $0x18] sm:$0xf]
    %v48 = vld [vmem:[%s0 + $0x1c] sm:$0xf]
    %v49 = vld [vmem:[%s1] sm:$0xf]
    %v50 = vld [vmem:[%s1 + $0x4] sm:$0xf]
    %v51 = vld [vmem:[%s1 + $0x8] sm:$0xf]
    %v52 = vld [vmem:[%s1 + $0xc] sm:$0xf]
    %v53 = vld [vmem:[%s1 + $0x10] sm:$0xf]
    %v54 = vld [vmem:[%s1 + $0x14] sm:$0xf]
    %v55 = vld [vmem:[%s1 + $0x18] sm:$0xf]
    %v56 = vld [vmem:[%s1 + $0x1c] sm:$0xf]
    %v57 = vld [vmem:[%s1 + $0x20] sm:$0xf]
    %v58 = vld [vmem:[%s1 + $0x24] sm:$0xf]
    %v59 = vld [vmem:[%s1 + $0x28] sm:$0xf]
    %v60 = vld [vmem:[%s1 + $0x2c] sm:$0xf]
    %v61 = vld [vmem:[%s1 + $0x30] sm:$0xf]
    %v62 = vld [vmem:[%s1 + $0x34] sm:$0xf]
    %v63 = vld [vmem:[%s1 + $0x38] sm:$0xf]
    %v64 = vld [vmem:[%s1 + $0x3c] sm:$0xf]
    %v65 = vld [vmem:[%s2] sm:$0x1]
    %v67 = vlaneseq
    %v68 = vshrl.u32 %v67, 7
    %v69 = vsub.s32 0, %v68
    %v70 = vrot.slane %v65, %v69
    %v80 = vunpack.c.l.b16 %v41
    %v81 = vunpack.c.l.b16 %v42
    %v82 = vunpack.c.l.b16 %v43
    %v83 = vunpack.c.l.b16 %v44
    %v84 = vunpack.c.l.b16 %v45
    %v85 = vunpack.c.l.b16 %v46
    %v86 = vunpack.c.l.b16 %v47
    %v87 = vunpack.c.l.b16 %v48
    %v88 = vpack.c.b16 %v81, %v80
    %v89 = vpack.c.b16 %v83, %v82
    %v90 = vpack.c.b16 %v85, %v84
    %v91 = vpack.c.b16 %v87, %v86
    %v112 = vunpack.c.l.b16 %v49
    %v113 = vunpack.c.l.b16 %v50
    %v114 = vunpack.c.l.b16 %v51
    %v115 = vunpack.c.l.b16 %v52
    %v116 = vunpack.c.l.b16 %v53
    %v117 = vunpack.c.l.b16 %v54
    %v118 = vunpack.c.l.b16 %v55
    %v119 = vunpack.c.l.b16 %v56
    %v120 = vunpack.c.l.b16 %v57
    %v121 = vunpack.c.l.b16 %v58
    %v122 = vunpack.c.l.b16 %v59
    %v123 = vunpack.c.l.b16 %v60
    %v124 = vunpack.c.l.b16 %v61
    %v125 = vunpack.c.l.b16 %v62
    %v126 = vunpack.c.l.b16 %v63
    %v127 = vunpack.c.l.b16 %v64
    %v128 = vpack.c.b16 %v113, %v112
    %v129 = vpack.c.b16 %v115, %v114
    %v130 = vpack.c.b16 %v117, %v116
    %v131 = vpack.c.b16 %v119, %v118
    %v132 = vpack.c.b16 %v121, %v120
    %v133 = vpack.c.b16 %v123, %v122
    %v134 = vpack.c.b16 %v125, %v124
    %v135 = vpack.c.b16 %v127, %v126
    %144 = vmatprep.subr.bf16.mxu0 0
    %145 = vmatpush1.bf16.msra.mxu0 %v135
    %146 = vmatprep.subr.bf16.mxu0 0
    %147 = vmatpush1.bf16.msra.mxu0 %v134
    %148 = vmatprep.subr.bf16.mxu0 0
    %149 = vmatpush1.bf16.msra.mxu0 %v133
    %150 = vmatprep.subr.bf16.mxu0 0
    %151 = vmatpush1.bf16.msra.mxu0 %v132
    %152 = vmatprep.subr.bf16.mxu0 0
    %153 = vmatpush1.bf16.msra.mxu0 %v131
    %154 = vmatprep.subr.bf16.mxu0 0
    %155 = vmatpush1.bf16.msra.mxu0 %v130
    %156 = vmatprep.subr.bf16.mxu0 0
    %157 = vmatpush1.bf16.msra.mxu0 %v129
    %158 = vmatprep.subr.bf16.mxu0 0
    %159 = vmatpush1.bf16.msra.mxu0 %v128
    %160 = vmatprep.subr.bf16.mxu0 0
    %161 = vmatpush2.bf16.msra.mxu0 0
    %162 = vmatprep.subr.bf16.mxu0 0
    %163 = vmatpush2.bf16.msra.mxu0 0
    %164 = vmatprep.subr.bf16.mxu0 0
    %165 = vmatpush2.bf16.msra.mxu0 0
    %166 = vmatprep.subr.bf16.mxu0 0
    %167 = vmatpush2.bf16.msra.mxu0 0
    %168 = vmatprep.subr.bf16.mxu0 0
    %169 = vmatpush2.bf16.msra.mxu0 0
    %170 = vmatprep.subr.bf16.mxu0 0
    %171 = vmatpush2.bf16.msra.mxu0 0
    %172 = vmatprep.subr.bf16.mxu0 0
    %173 = vmatpush2.bf16.msra.mxu0 0
    %174 = vmatprep.subr.bf16.mxu0 0
    %175 = vmatpush2.bf16.msra.mxu0 0
    %176 = vmatprep.mubr.bf16.mxu0 0
    %177 = vmatmul.mubr.bf16.gmra.mxu0 %v88
    %v178 = vpop.f32.mrf.mxu0
    %v179 = vadd.f32 %v70, %v178
    %v180 = vpop.f32.mrf.mxu0
    %v181 = vpop.f32.mrf.mxu0
    %v182 = vadd.f32 %v70, %v181
    %v183 = vpop.f32.mrf.mxu0
    %184 = vmatprep.mubr.bf16.mxu0 0
    %185 = vmatmul.mubr.bf16.gmra.mxu0 %v89
    %v186 = vpop.f32.mrf.mxu0
    %v187 = vadd.f32 %v70, %v186
    %v188 = vpop.f32.mrf.mxu0
    %v189 = vpop.f32.mrf.mxu0
    %v190 = vadd.f32 %v70, %v189
    %v191 = vpop.f32.mrf.mxu0
    %192 = vmatprep.mubr.bf16.mxu0 0
    %193 = vmatmul.mubr.bf16.gmra.mxu0 %v90
    %v194 = vpop.f32.mrf.mxu0
    %v195 = vadd.f32 %v70, %v194
    %v196 = vpop.f32.mrf.mxu0
    %v197 = vpop.f32.mrf.mxu0
    %v198 = vadd.f32 %v70, %v197
    %v199 = vpop.f32.mrf.mxu0
    %200 = vmatprep.mubr.bf16.mxu0 0
    %201 = vmatmul.mubr.bf16.gmra.mxu0 %v91
    %v202 = vpop.f32.mrf.mxu0
    %v203 = vadd.f32 %v70, %v202
    %v204 = vpop.f32.mrf.mxu0
    %v205 = vpop.f32.mrf.mxu0
    %v206 = vadd.f32 %v70, %v205
    %v207 = vpop.f32.mrf.mxu0
    %208 = vdwg.mxu0
    %v209 = vmax.f32 %v179, 0.0
    %v210 = vmax.f32 %v182, 0.0
    %v211 = vmax.f32 %v187, 0.0
    %v212 = vmax.f32 %v190, 0.0
    %v213 = vmax.f32 %v195, 0.0
    %v214 = vmax.f32 %v198, 0.0
    %v215 = vmax.f32 %v203, 0.0
    %v216 = vmax.f32 %v206, 0.0
    %v217 = vpack.c.bf16 %v210, %v209
    %v218 = vpack.c.bf16 %v212, %v211
    %v219 = vpack.c.bf16 %v214, %v213
    %v220 = vpack.c.bf16 %v216, %v215
    %v221 = vld [vmem:[%s3] sm:$0xf]
    %v222 = vld [vmem:[%s3 + $0x4] sm:$0xf]
    %v223 = vld [vmem:[%s3 + $0x8] sm:$0xf]
    %v224 = vld [vmem:[%s3 + $0xc] sm:$0xf]
    %v225 = vld [vmem:[%s3 + $0x10] sm:$0xf]
    %v226 = vld [vmem:[%s3 + $0x14] sm:$0xf]
    %v227 = vld [vmem:[%s3 + $0x18] sm:$0xf]
    %v228 = vld [vmem:[%s3 + $0x1c] sm:$0xf]
    %v229 = vld [vmem:[%s3 + $0x20] sm:$0xf]
    %v230 = vld [vmem:[%s3 + $0x24] sm:$0xf]
    %v231 = vld [vmem:[%s3 + $0x28] sm:$0xf]
    %v232 = vld [vmem:[%s3 + $0x2c] sm:$0xf]
    %v233 = vld [vmem:[%s3 + $0x30] sm:$0xf]
    %v234 = vld [vmem:[%s3 + $0x34] sm:$0xf]
    %v235 = vld [vmem:[%s3 + $0x38] sm:$0xf]
    %v236 = vld [vmem:[%s3 + $0x3c] sm:$0xf]
    %v237 = vld [vmem:[%s4] sm:$0x1]
    %v239 = vlaneseq
    %v240 = vshrl.u32 %v239, 7
    %v241 = vsub.s32 0, %v240
    %v242 = vrot.slane %v237, %v241
    %v260 = vunpack.c.l.b16 %v221
    %v261 = vunpack.c.l.b16 %v222
    %v262 = vunpack.c.l.b16 %v223
    %v263 = vunpack.c.l.b16 %v224
    %v264 = vunpack.c.l.b16 %v225
    %v265 = vunpack.c.l.b16 %v226
    %v266 = vunpack.c.l.b16 %v227
    %v267 = vunpack.c.l.b16 %v228
    %v268 = vunpack.c.l.b16 %v229
    %v269 = vunpack.c.l.b16 %v230
    %v270 = vunpack.c.l.b16 %v231
    %v271 = vunpack.c.l.b16 %v232
    %v272 = vunpack.c.l.b16 %v233
    %v273 = vunpack.c.l.b16 %v234
    %v274 = vunpack.c.l.b16 %v235
    %v275 = vunpack.c.l.b16 %v236
    %v276 = vpack.c.b16 %v261, %v260
    %v277 = vpack.c.b16 %v263, %v262
    %v278 = vpack.c.b16 %v265, %v264
    %v279 = vpack.c.b16 %v267, %v266
    %v280 = vpack.c.b16 %v269, %v268
    %v281 = vpack.c.b16 %v271, %v270
    %v282 = vpack.c.b16 %v273, %v272
    %v283 = vpack.c.b16 %v275, %v274
    %292 = vmatprep.subr.bf16.mxu0 0
    %293 = vmatpush1.bf16.msra.mxu0 %v283
    %294 = vmatprep.subr.bf16.mxu0 0
    %295 = vmatpush1.bf16.msra.mxu0 %v282
    %296 = vmatprep.subr.bf16.mxu0 0
    %297 = vmatpush1.bf16.msra.mxu0 %v281
    %298 = vmatprep.subr.bf16.mxu0 0
    %299 = vmatpush1.bf16.msra.mxu0 %v280
    %300 = vmatprep.subr.bf16.mxu0 0
    %301 = vmatpush1.bf16.msra.mxu0 %v279
    %302 = vmatprep.subr.bf16.mxu0 0
    %303 = vmatpush1.bf16.msra.mxu0 %v278
    %304 = vmatprep.subr.bf16.mxu0 0
    %305 = vmatpush1.bf16.msra.mxu0 %v277
    %306 = vmatprep.subr.bf16.mxu0 0
    %307 = vmatpush1.bf16.msra.mxu0 %v276
    %308 = vmatprep.subr.bf16.mxu0 0
    %309 = vmatpush2.bf16.msra.mxu0 0
    %310 = vmatprep.subr.bf16.mxu0 0
    %311 = vmatpush2.bf16.msra.mxu0 0
    %312 = vmatprep.subr.bf16.mxu0 0
    %313 = vmatpush2.bf16.msra.mxu0 0
    %314 = vmatprep.subr.bf16.mxu0 0
    %315 = vmatpush2.bf16.msra.mxu0 0
    %316 = vmatprep.subr.bf16.mxu0 0
    %317 = vmatpush2.bf16.msra.mxu0 0
    %318 = vmatprep.subr.bf16.mxu0 0
    %319 = vmatpush2.bf16.msra.mxu0 0
    %320 = vmatprep.subr.bf16.mxu0 0
    %321 = vmatpush2.bf16.msra.mxu0 0
    %322 = vmatprep.subr.bf16.mxu0 0
    %323 = vmatpush2.bf16.msra.mxu0 0
    %324 = vmatprep.mubr.bf16.mxu0 0
    %325 = vmatmul.mubr.bf16.gmra.mxu0 %v217
    %v326 = vpop.f32.mrf.mxu0
    %v327 = vadd.f32 %v242, %v326
    %v328 = vpop.f32.mrf.mxu0
    %v329 = vpop.f32.mrf.mxu0
    %v330 = vadd.f32 %v242, %v329
    %v331 = vpop.f32.mrf.mxu0
    %332 = vmatprep.mubr.bf16.mxu0 0
    %333 = vmatmul.mubr.bf16.gmra.mxu0 %v218
    %v334 = vpop.f32.mrf.mxu0
    %v335 = vadd.f32 %v242, %v334
    %v336 = vpop.f32.mrf.mxu0
    %v337 = vpop.f32.mrf.mxu0
    %v338 = vadd.f32 %v242, %v337
    %v339 = vpop.f32.mrf.mxu0
    %340 = vmatprep.mubr.bf16.mxu0 0
    %341 = vmatmul.mubr.bf16.gmra.mxu0 %v219
    %v342 = vpop.f32.mrf.mxu0
    %v343 = vadd.f32 %v242, %v342
    %v344 = vpop.f32.mrf.mxu0
    %v345 = vpop.f32.mrf.mxu0
    %v346 = vadd.f32 %v242, %v345
    %v347 = vpop.f32.mrf.mxu0
    %348 = vmatprep.mubr.bf16.mxu0 0
    %349 = vmatmul.mubr.bf16.gmra.mxu0 %v220
    %v350 = vpop.f32.mrf.mxu0
    %v351 = vadd.f32 %v242, %v350
    %v352 = vpop.f32.mrf.mxu0
    %v353 = vpop.f32.mrf.mxu0
    %v354 = vadd.f32 %v242, %v353
    %v355 = vpop.f32.mrf.mxu0
    %356 = vdwg.mxu0
    %v357 = vmax.f32 %v327, 0.0
    %v358 = vmax.f32 %v330, 0.0
    %v359 = vmax.f32 %v335, 0.0
    %v360 = vmax.f32 %v338, 0.0
    %v361 = vmax.f32 %v343, 0.0
    %v362 = vmax.f32 %v346, 0.0
    %v363 = vmax.f32 %v351, 0.0
    %v364 = vmax.f32 %v354, 0.0
    %v365 = vpack.c.bf16 %v358, %v357
    %v366 = vpack.c.bf16 %v360, %v359
    %v367 = vpack.c.bf16 %v362, %v361
    %v368 = vpack.c.bf16 %v364, %v363
    %v369 = vld [vmem:[#allocation2] sm:$0xf]
    %v370 = vld [vmem:[#allocation2 + $0x4] sm:$0xf]
    %v371 = vld [vmem:[#allocation2 + $0x8] sm:$0xf]
    %v372 = vld [vmem:[#allocation2 + $0xc] sm:$0xf]
    %v373 = vld [vmem:[#allocation2 + $0x10] sm:$0xf]
    %v374 = vld [vmem:[#allocation2 + $0x14] sm:$0xf]
    %v375 = vld [vmem:[#allocation2 + $0x18] sm:$0xf]
    %v376 = vld [vmem:[#allocation2 + $0x1c] sm:$0xf]
    %v377 = vld [vmem:[#allocation2 + $0x20] sm:$0xf]
    %v378 = vld [vmem:[#allocation2 + $0x24] sm:$0xf]
    %v379 = vld [vmem:[#allocation2 + $0x28] sm:$0xf]
    %v380 = vld [vmem:[#allocation2 + $0x2c] sm:$0xf]
    %v381 = vld [vmem:[#allocation2 + $0x30] sm:$0xf]
    %v382 = vld [vmem:[#allocation2 + $0x34] sm:$0xf]
    %v383 = vld [vmem:[#allocation2 + $0x38] sm:$0xf]
    %v384 = vld [vmem:[#allocation2 + $0x3c] sm:$0xf]
    %v385 = vld [vmem:[%s6] sm:$0x1]
    %v387 = vlaneseq
    %v388 = vshrl.u32 %v387, 7
    %v389 = vsub.s32 0, %v388
    %v390 = vrot.slane %v385, %v389
    %v408 = vunpack.c.l.b16 %v369
    %v409 = vunpack.c.l.b16 %v370
    %v410 = vunpack.c.l.b16 %v371
    %v411 = vunpack.c.l.b16 %v372
    %v412 = vunpack.c.l.b16 %v373
    %v413 = vunpack.c.l.b16 %v374
    %v414 = vunpack.c.l.b16 %v375
    %v415 = vunpack.c.l.b16 %v376
    %v416 = vunpack.c.l.b16 %v377
    %v417 = vunpack.c.l.b16 %v378
    %v418 = vunpack.c.l.b16 %v379
    %v419 = vunpack.c.l.b16 %v380
    %v420 = vunpack.c.l.b16 %v381
    %v421 = vunpack.c.l.b16 %v382
    %v422 = vunpack.c.l.b16 %v383
    %v423 = vunpack.c.l.b16 %v384
    %v424 = vpack.c.b16 %v409, %v408
    %v425 = vpack.c.b16 %v411, %v410
    %v426 = vpack.c.b16 %v413, %v412
    %v427 = vpack.c.b16 %v415, %v414
    %v428 = vpack.c.b16 %v417, %v416
    %v429 = vpack.c.b16 %v419, %v418
    %v430 = vpack.c.b16 %v421, %v420
    %v431 = vpack.c.b16 %v423, %v422
    %440 = vmatprep.subr.bf16.mxu0 0
    %441 = vmatpush1.bf16.msra.mxu0 %v431
    %442 = vmatprep.subr.bf16.mxu0 0
    %443 = vmatpush1.bf16.msra.mxu0 %v430
    %444 = vmatprep.subr.bf16.mxu0 0
    %445 = vmatpush1.bf16.msra.mxu0 %v429
    %446 = vmatprep.subr.bf16.mxu0 0
    %447 = vmatpush1.bf16.msra.mxu0 %v428
    %448 = vmatprep.subr.bf16.mxu0 0
    %449 = vmatpush1.bf16.msra.mxu0 %v427
    %450 = vmatprep.subr.bf16.mxu0 0
    %451 = vmatpush1.bf16.msra.mxu0 %v426
    %452 = vmatprep.subr.bf16.mxu0 0
    %453 = vmatpush1.bf16.msra.mxu0 %v425
    %454 = vmatprep.subr.bf16.mxu0 0
    %455 = vmatpush1.bf16.msra.mxu0 %v424
    %456 = vmatprep.subr.bf16.mxu0 0
    %457 = vmatpush2.bf16.msra.mxu0 0
    %458 = vmatprep.subr.bf16.mxu0 0
    %459 = vmatpush2.bf16.msra.mxu0 0
    %460 = vmatprep.subr.bf16.mxu0 0
    %461 = vmatpush2.bf16.msra.mxu0 0
    %462 = vmatprep.subr.bf16.mxu0 0
    %463 = vmatpush2.bf16.msra.mxu0 0
    %464 = vmatprep.subr.bf16.mxu0 0
    %465 = vmatpush2.bf16.msra.mxu0 0
    %466 = vmatprep.subr.bf16.mxu0 0
    %467 = vmatpush2.bf16.msra.mxu0 0
    %468 = vmatprep.subr.bf16.mxu0 0
    %469 = vmatpush2.bf16.msra.mxu0 0
    %470 = vmatprep.subr.bf16.mxu0 0
    %471 = vmatpush2.bf16.msra.mxu0 0
    %472 = vmatprep.mubr.bf16.mxu0 0
    %473 = vmatmul.mubr.bf16.gmra.mxu0 %v365
    %v474 = vpop.f32.mrf.mxu0
    %v475 = vadd.f32 %v390, %v474
    %v476 = vpop.f32.mrf.mxu0
    %v477 = vpop.f32.mrf.mxu0
    %v478 = vadd.f32 %v390, %v477
    %v479 = vpop.f32.mrf.mxu0
    %480 = vmatprep.mubr.bf16.mxu0 0
    %481 = vmatmul.mubr.bf16.gmra.mxu0 %v366
    %v482 = vpop.f32.mrf.mxu0
    %v483 = vadd.f32 %v390, %v482
    %v484 = vpop.f32.mrf.mxu0
    %v485 = vpop.f32.mrf.mxu0
    %v486 = vadd.f32 %v390, %v485
    %v487 = vpop.f32.mrf.mxu0
    %488 = vmatprep.mubr.bf16.mxu0 0
    %489 = vmatmul.mubr.bf16.gmra.mxu0 %v367
    %v490 = vpop.f32.mrf.mxu0
    %v491 = vadd.f32 %v390, %v490
    %v492 = vpop.f32.mrf.mxu0
    %v493 = vpop.f32.mrf.mxu0
    %v494 = vadd.f32 %v390, %v493
    %v495 = vpop.f32.mrf.mxu0
    %496 = vmatprep.mubr.bf16.mxu0 0
    %497 = vmatmul.mubr.bf16.gmra.mxu0 %v368
    %v498 = vpop.f32.mrf.mxu0
    %v499 = vadd.f32 %v390, %v498
    %v500 = vpop.f32.mrf.mxu0
    %v501 = vpop.f32.mrf.mxu0
    %v502 = vadd.f32 %v390, %v501
    %v503 = vpop.f32.mrf.mxu0
    %504 = vdwg.mxu0
    %v505 = vpack.c.bf16 %v478, %v475
    %v506 = vpack.c.bf16 %v486, %v483
    %v507 = vpack.c.bf16 %v494, %v491
    %v508 = vpack.c.bf16 %v502, %v499
    %v513 = vunpack.c.l.b16 %v505
    %v514 = vunpack.c.h.b16 %v505
    %v515 = vunpack.c.l.b16 %v506
    %v516 = vunpack.c.h.b16 %v506
    %v517 = vunpack.c.l.b16 %v507
    %v518 = vunpack.c.h.b16 %v507
    %v519 = vunpack.c.l.b16 %v508
    %v520 = vunpack.c.h.b16 %v508
    %v521 = vpack.c.b16 %v513, %v513
    %v522 = vpack.c.b16 %v514, %v514
    %v523 = vpack.c.b16 %v515, %v515
    %v524 = vpack.c.b16 %v516, %v516
    %v525 = vpack.c.b16 %v517, %v517
    %v526 = vpack.c.b16 %v518, %v518
    %v527 = vpack.c.b16 %v519, %v519
    %v528 = vpack.c.b16 %v520, %v520
    %537 = vst [vmem:[%s7] sm:$0xf] %v521
    %538 = vst [vmem:[%s7 + $0x4] sm:$0xf] %v522
    %539 = vst [vmem:[%s7 + $0x8] sm:$0xf] %v523
    %540 = vst [vmem:[%s7 + $0xc] sm:$0xf] %v524
    %541 = vst [vmem:[%s7 + $0x10] sm:$0xf] %v525
    %542 = vst [vmem:[%s7 + $0x14] sm:$0xf] %v526
    %543 = vst [vmem:[%s7 + $0x18] sm:$0xf] %v527
    %544 = vst [vmem:[%s7 + $0x1c] sm:$0xf] %v528
    // Predicated region
    $region34: #{neural_net_forward.1} parent=1 // pred_check
      _
    $region35: #{neural_net_forward.1} parent=1 // pred_check_branch
      %546 = sbr.rel (0) target = $region37
    $region36: #{neural_net_forward.1} parent=1 // pred_region
      _
    $region37: #{neural_net_forward.1} parent=1 // pred_fallthru
      _
    // Predicated region
    $region38: #{neural_net_forward.1} parent=1 // pred_check
      _
    $region39: #{neural_net_forward.1} parent=1 // pred_check_branch
      %548 = sbr.rel (0) target = $region41
    $region40: #{neural_net_forward.1} parent=1 // pred_region
      _
    $region41: #{neural_net_forward.1} parent=1 // pred_fallthru
      _
    %549 = vsyncpa [#allocation3], 1

</llo_original>
